<compile_context>
chip_gen: v5e
topology: v5e:2x2
jax: 0.10.0
libtpu: 0.0.40
codegen_flags: <defaults>
</compile_context>

<pallas_src>
import functools

import jax
import jax.numpy as jnp
from jax.experimental import pallas as pl
from jax.experimental.pallas import tpu as pltpu  # noqa: F401  (TPU backend)

# ---- small config consistent with the module ----
B, T = 2, 8          # batch, sequence length (<= Head's block_size=32 tril)
E = 32               # n_embed
N_HEAD = 4
HS = E // N_HEAD     # head_size


def mha_kernel(x_ref, wq_ref, wk_ref, wv_ref, wo_ref, bo_ref, o_ref,
               *, batch, seq, n_head):
    e = x_ref.shape[-1]
    hs = e // n_head
    x = x_ref[...]                                          # (B*T, E)

    # Full-slab projections (1/sqrt(n_embed) already folded into Wq).
    q = jnp.dot(x, wq_ref[...], preferred_element_type=jnp.float32)
    k = jnp.dot(x, wk_ref[...], preferred_element_type=jnp.float32)
    v = jnp.dot(x, wv_ref[...], preferred_element_type=jnp.float32)

    def split_heads(a):                                     # (B*T, E) -> (H*B, T, HS)
        return jnp.concatenate(
            [a[:, h * hs:(h + 1) * hs].reshape(batch, seq, hs)
             for h in range(n_head)],
            axis=0)

    qh, kh, vh = split_heads(q), split_heads(k), split_heads(v)

    # Batched attention over the fused (head, batch) axis — one MXU stream.
    s = jnp.einsum('bqd,bkd->bqk', qh, kh,
                   preferred_element_type=jnp.float32)       # (H*B, T, T)
    row = jax.lax.broadcasted_iota(jnp.int32, (seq, seq), 0)
    col = jax.lax.broadcasted_iota(jnp.int32, (seq, seq), 1)
    # Causal (tril) mask; large finite negative fill (Python literal, not a
    # captured jax.Array constant) keeps exp() NaN-safe.
    s = jnp.where((row >= col)[None, :, :], s, -1e30)
    s = s - jnp.max(s, axis=-1, keepdims=True)
    p = jnp.exp(s)
    p = p * pl.reciprocal(jnp.sum(p, axis=-1, keepdims=True), approx=True)
    att = jnp.einsum('bqk,bkd->bqd', p, vh,
                     preferred_element_type=jnp.float32)     # (H*B, T, HS)

    # Output projection accumulated per head slice of Wo (no lane concat).
    acc = jnp.zeros((batch * seq, e), jnp.float32)
    for h in range(n_head):
        att_h = att[h * batch:(h + 1) * batch].reshape(batch * seq, hs)
        acc = acc + jnp.dot(att_h, wo_ref[h * hs:(h + 1) * hs, :],
                            preferred_element_type=jnp.float32)
    o_ref[...] = acc + bo_ref[...]                           # dropout(p=0) == identity


def multi_head_attention(x, params):
    """x: (B, T, E) float32 -> (B, T, E) float32."""
    b, t, e = x.shape
    out = pl.pallas_call(
        functools.partial(mha_kernel, batch=b, seq=t, n_head=N_HEAD),
        out_shape=jax.ShapeDtypeStruct((b * t, e), x.dtype),
    )(x.reshape(b * t, e),
      params["wq_scaled"], params["wk"], params["wv"],
      params["wo"], params["bo"])
    return out.reshape(b, t, e)


# ---------------- parameter init (deterministic, synthetic) ----------------
def init_params(key):
    ks = jax.random.split(key, 5)
    scale = 0.05
    wq = scale * jax.random.normal(ks[0], (E, E), jnp.float32)  # per-head Wq concat
    wk = scale * jax.random.normal(ks[1], (E, E), jnp.float32)
    wv = scale * jax.random.normal(ks[2], (E, E), jnp.float32)
    wo = scale * jax.random.normal(ks[3], (E, E), jnp.float32)
    bo = scale * jax.random.normal(ks[4], (1, E), jnp.float32)
    return dict(wq=wq, wk=wk, wv=wv, wo=wo, bo=bo,
                wq_scaled=wq * (float(E) ** -0.5))  # fold C**-0.5 (C = n_embed)


# ---------------- pure-JAX reference (for correctness check) ----------------
def mha_reference(x, params):
    b, t, e = x.shape
    hp = jax.lax.Precision.HIGHEST
    q = jnp.einsum('bte,ef->btf', x, params["wq"], precision=hp)
    k = jnp.einsum('bte,ef->btf', x, params["wk"], precision=hp)
    v = jnp.einsum('bte,ef->btf', x, params["wv"], precision=hp)
    qh = q.reshape(b, t, N_HEAD, HS)
    kh = k.reshape(b, t, N_HEAD, HS)
    vh = v.reshape(b, t, N_HEAD, HS)
    s = jnp.einsum('bqhd,bkhd->bhqk', qh, kh, precision=hp) * (float(E) ** -0.5)
    mask = jnp.tril(jnp.ones((t, t), bool))
    s = jnp.where(mask[None, None], s, -jnp.inf)
    p = jax.nn.softmax(s, axis=-1)
    att = jnp.einsum('bhqk,bkhd->bqhd', p, vh, precision=hp).reshape(b, t, e)
    return jnp.einsum('bte,ef->btf', att, params["wo"], precision=hp) + params["bo"][0]


if __name__ == "__main__":
    key = jax.random.PRNGKey(0)
    k_param, k_x = jax.random.split(key)
    params = init_params(k_param)
    x = jax.random.normal(k_x, (B, T, E), dtype=jnp.float32)

    out = jax.block_until_ready(multi_head_attention(x, params))
    assert out.shape == (B, T, E) and out.dtype == jnp.float32

    ref = mha_reference(x, params)
    max_err = float(jnp.max(jnp.abs(out - ref)))
    # Loose tolerance: approx reciprocal (EUP) introduces ~1e-3 relative error.
    assert jnp.allclose(out, ref, rtol=5e-2, atol=5e-3), max_err

    print("KERNEL_OK")
</pallas_src>

<mosaic_0001>
module attributes {stable_mosaic.version = 11 : i64} {
  func.func @mha_kernel(%arg0: memref<16x32xf32, #tpu.memory_space<vmem>>, %arg1: memref<32x32xf32, #tpu.memory_space<vmem>>, %arg2: memref<32x32xf32, #tpu.memory_space<vmem>>, %arg3: memref<32x32xf32, #tpu.memory_space<vmem>>, %arg4: memref<32x32xf32, #tpu.memory_space<vmem>>, %arg5: memref<1x32xf32, #tpu.memory_space<vmem>>, %arg6: memref<16x32xf32, #tpu.memory_space<vmem>>) attributes {dimension_semantics = [], scalar_prefetch = 0 : i64, scratch_operands = 0 : i64, tpu.core_type = #tpu.core_type<tc>} {
    %c0 = arith.constant 0 : index
    %c0_0 = arith.constant 0 : index
    %0 = vector.load %arg0[%c0, %c0_0] : memref<16x32xf32, #tpu.memory_space<vmem>>, vector<16x32xf32>
    %c0_1 = arith.constant 0 : index
    %c0_2 = arith.constant 0 : index
    %1 = vector.load %arg1[%c0_1, %c0_2] : memref<32x32xf32, #tpu.memory_space<vmem>>, vector<32x32xf32>
    %cst = arith.constant dense<0.000000e+00> : vector<16x32xf32>
    %2 = tpu.matmul %0, %1, %cst {dimension_numbers = #tpu.dot_dimension_numbers<[1], [0], [0], [1], [0, 0, 1, 1], [], []>} : vector<16x32xf32>, vector<32x32xf32>, vector<16x32xf32> -> vector<16x32xf32>
    %c0_3 = arith.constant 0 : index
    %c0_4 = arith.constant 0 : index
    %3 = vector.load %arg2[%c0_3, %c0_4] : memref<32x32xf32, #tpu.memory_space<vmem>>, vector<32x32xf32>
    %cst_5 = arith.constant dense<0.000000e+00> : vector<16x32xf32>
    %4 = tpu.matmul %0, %3, %cst_5 {dimension_numbers = #tpu.dot_dimension_numbers<[1], [0], [0], [1], [0, 0, 1, 1], [], []>} : vector<16x32xf32>, vector<32x32xf32>, vector<16x32xf32> -> vector<16x32xf32>
    %c0_6 = arith.constant 0 : index
    %c0_7 = arith.constant 0 : index
    %5 = vector.load %arg3[%c0_6, %c0_7] : memref<32x32xf32, #tpu.memory_space<vmem>>, vector<32x32xf32>
    %cst_8 = arith.constant dense<0.000000e+00> : vector<16x32xf32>
    %6 = tpu.matmul %0, %5, %cst_8 {dimension_numbers = #tpu.dot_dimension_numbers<[1], [0], [0], [1], [0, 0, 1, 1], [], []>} : vector<16x32xf32>, vector<32x32xf32>, vector<16x32xf32> -> vector<16x32xf32>
    %7 = vector.extract_strided_slice %2 {offsets = [0, 0], sizes = [16, 8], strides = [1, 1]} : vector<16x32xf32> to vector<16x8xf32>
    %8 = vector.shape_cast %7 : vector<16x8xf32> to vector<2x8x8xf32>
    %9 = vector.extract_strided_slice %2 {offsets = [0, 8], sizes = [16, 8], strides = [1, 1]} : vector<16x32xf32> to vector<16x8xf32>
    %10 = vector.shape_cast %9 : vector<16x8xf32> to vector<2x8x8xf32>
    %11 = vector.extract_strided_slice %2 {offsets = [0, 16], sizes = [16, 8], strides = [1, 1]} : vector<16x32xf32> to vector<16x8xf32>
    %12 = vector.shape_cast %11 : vector<16x8xf32> to vector<2x8x8xf32>
    %13 = vector.extract_strided_slice %2 {offsets = [0, 24], sizes = [16, 8], strides = [1, 1]} : vector<16x32xf32> to vector<16x8xf32>
    %14 = vector.shape_cast %13 : vector<16x8xf32> to vector<2x8x8xf32>
    %15 = tpu.concatenate %8, %10, %12, %14 in 0 : vector<2x8x8xf32>, vector<2x8x8xf32>, vector<2x8x8xf32>, vector<2x8x8xf32> -> vector<8x8x8xf32>
    %16 = vector.extract_strided_slice %4 {offsets = [0, 0], sizes = [16, 8], strides = [1, 1]} : vector<16x32xf32> to vector<16x8xf32>
    %17 = vector.shape_cast %16 : vector<16x8xf32> to vector<2x8x8xf32>
    %18 = vector.extract_strided_slice %4 {offsets = [0, 8], sizes = [16, 8], strides = [1, 1]} : vector<16x32xf32> to vector<16x8xf32>
    %19 = vector.shape_cast %18 : vector<16x8xf32> to vector<2x8x8xf32>
    %20 = vector.extract_strided_slice %4 {offsets = [0, 16], sizes = [16, 8], strides = [1, 1]} : vector<16x32xf32> to vector<16x8xf32>
    %21 = vector.shape_cast %20 : vector<16x8xf32> to vector<2x8x8xf32>
    %22 = vector.extract_strided_slice %4 {offsets = [0, 24], sizes = [16, 8], strides = [1, 1]} : vector<16x32xf32> to vector<16x8xf32>
    %23 = vector.shape_cast %22 : vector<16x8xf32> to vector<2x8x8xf32>
    %24 = tpu.concatenate %17, %19, %21, %23 in 0 : vector<2x8x8xf32>, vector<2x8x8xf32>, vector<2x8x8xf32>, vector<2x8x8xf32> -> vector<8x8x8xf32>
    %25 = vector.extract_strided_slice %6 {offsets = [0, 0], sizes = [16, 8], strides = [1, 1]} : vector<16x32xf32> to vector<16x8xf32>
    %26 = vector.shape_cast %25 : vector<16x8xf32> to vector<2x8x8xf32>
    %27 = vector.extract_strided_slice %6 {offsets = [0, 8], sizes = [16, 8], strides = [1, 1]} : vector<16x32xf32> to vector<16x8xf32>
    %28 = vector.shape_cast %27 : vector<16x8xf32> to vector<2x8x8xf32>
    %29 = vector.extract_strided_slice %6 {offsets = [0, 16], sizes = [16, 8], strides = [1, 1]} : vector<16x32xf32> to vector<16x8xf32>
    %30 = vector.shape_cast %29 : vector<16x8xf32> to vector<2x8x8xf32>
    %31 = vector.extract_strided_slice %6 {offsets = [0, 24], sizes = [16, 8], strides = [1, 1]} : vector<16x32xf32> to vector<16x8xf32>
    %32 = vector.shape_cast %31 : vector<16x8xf32> to vector<2x8x8xf32>
    %33 = tpu.concatenate %26, %28, %30, %32 in 0 : vector<2x8x8xf32>, vector<2x8x8xf32>, vector<2x8x8xf32>, vector<2x8x8xf32> -> vector<8x8x8xf32>
    "tpu.trace_start"() <{level = 10 : i32, message = "bqd,bkd->bqk"}> : () -> ()
    %cst_9 = arith.constant dense<0.000000e+00> : vector<8x8x8xf32>
    %34 = tpu.matmul %15, %24, %cst_9 {dimension_numbers = #tpu.dot_dimension_numbers<[2], [2], [1], [1], [0, 0, 0, 1, 1, 1], [0], [0]>} : vector<8x8x8xf32>, vector<8x8x8xf32>, vector<8x8x8xf32> -> vector<8x8x8xf32>
    "tpu.trace_stop"() : () -> ()
    %35 = tpu.iota {dimensions = array<i32: 0>} : vector<8x8xi32>
    %36 = tpu.iota {dimensions = array<i32: 1>} : vector<8x8xi32>
    %37 = arith.cmpi sge, %35, %36 : vector<8x8xi32>
    %38 = vector.shape_cast %37 : vector<8x8xi1> to vector<1x8x8xi1>
    %cst_10 = arith.constant -1.000000e+30 : f32
    %39 = vector.shape_cast %38 : vector<1x8x8xi1> to vector<1x8x8xi1>
    %40 = vector.broadcast %39 : vector<1x8x8xi1> to vector<8x8x8xi1>
    %41 = vector.broadcast %cst_10 : f32 to vector<8x8x8xf32>
    %42 = arith.select %40, %34, %41 : vector<8x8x8xi1>, vector<8x8x8xf32>
    %cst_11 = arith.constant dense<0xFF800000> : vector<8x8xf32>
    %43 = vector.multi_reduction <maximumf>, %42, %cst_11 [2] : vector<8x8x8xf32> to vector<8x8xf32>
    %44 = vector.shape_cast %43 : vector<8x8xf32> to vector<8x8x1xf32>
    %45 = vector.broadcast %44 : vector<8x8x1xf32> to vector<8x8x8xf32>
    %46 = arith.subf %42, %45 : vector<8x8x8xf32>
    %47 = math.exp %46 : vector<8x8x8xf32>
    %cst_12 = arith.constant dense<0.000000e+00> : vector<8x8xf32>
    %48 = vector.multi_reduction <add>, %47, %cst_12 [2] : vector<8x8x8xf32> to vector<8x8xf32>
    %49 = vector.shape_cast %48 : vector<8x8xf32> to vector<8x8x1xf32>
    %50 = tpu.reciprocal %49 {approx = true} : vector<8x8x1xf32> -> vector<8x8x1xf32>
    %51 = vector.broadcast %50 : vector<8x8x1xf32> to vector<8x8x8xf32>
    %52 = arith.mulf %47, %51 : vector<8x8x8xf32>
    "tpu.trace_start"() <{level = 10 : i32, message = "bqk,bkd->bqd"}> : () -> ()
    %cst_13 = arith.constant dense<0.000000e+00> : vector<8x8x8xf32>
    %53 = tpu.matmul %52, %33, %cst_13 {dimension_numbers = #tpu.dot_dimension_numbers<[2], [1], [1], [2], [0, 0, 0, 1, 1, 2], [0], [0]>} : vector<8x8x8xf32>, vector<8x8x8xf32>, vector<8x8x8xf32> -> vector<8x8x8xf32>
    %cst_14 = arith.constant 0.000000e+00 : f32
    "tpu.trace_stop"() : () -> ()
    %54 = vector.broadcast %cst_14 : f32 to vector<16x32xf32>
    %55 = vector.extract_strided_slice %53 {offsets = [0, 0, 0], sizes = [2, 8, 8], strides = [1, 1, 1]} : vector<8x8x8xf32> to vector<2x8x8xf32>
    %56 = vector.shape_cast %55 : vector<2x8x8xf32> to vector<16x8xf32>
    %c0_15 = arith.constant 0 : index
    %c0_16 = arith.constant 0 : index
    %57 = vector.load %arg4[%c0_15, %c0_16] : memref<32x32xf32, #tpu.memory_space<vmem>>, vector<8x32xf32>
    %cst_17 = arith.constant dense<0.000000e+00> : vector<16x32xf32>
    %58 = tpu.matmul %56, %57, %cst_17 {dimension_numbers = #tpu.dot_dimension_numbers<[1], [0], [0], [1], [0, 0, 1, 1], [], []>} : vector<16x8xf32>, vector<8x32xf32>, vector<16x32xf32> -> vector<16x32xf32>
    %59 = arith.addf %54, %58 : vector<16x32xf32>
    %60 = vector.extract_strided_slice %53 {offsets = [2, 0, 0], sizes = [2, 8, 8], strides = [1, 1, 1]} : vector<8x8x8xf32> to vector<2x8x8xf32>
    %61 = vector.shape_cast %60 : vector<2x8x8xf32> to vector<16x8xf32>
    %c8 = arith.constant 8 : index
    %c0_18 = arith.constant 0 : index
    %62 = vector.load %arg4[%c8, %c0_18] : memref<32x32xf32, #tpu.memory_space<vmem>>, vector<8x32xf32>
    %cst_19 = arith.constant dense<0.000000e+00> : vector<16x32xf32>
    %63 = tpu.matmul %61, %62, %cst_19 {dimension_numbers = #tpu.dot_dimension_numbers<[1], [0], [0], [1], [0, 0, 1, 1], [], []>} : vector<16x8xf32>, vector<8x32xf32>, vector<16x32xf32> -> vector<16x32xf32>
    %64 = arith.addf %59, %63 : vector<16x32xf32>
    %65 = vector.extract_strided_slice %53 {offsets = [4, 0, 0], sizes = [2, 8, 8], strides = [1, 1, 1]} : vector<8x8x8xf32> to vector<2x8x8xf32>
    %66 = vector.shape_cast %65 : vector<2x8x8xf32> to vector<16x8xf32>
    %c16 = arith.constant 16 : index
    %c0_20 = arith.constant 0 : index
    %67 = vector.load %arg4[%c16, %c0_20] : memref<32x32xf32, #tpu.memory_space<vmem>>, vector<8x32xf32>
    %cst_21 = arith.constant dense<0.000000e+00> : vector<16x32xf32>
    %68 = tpu.matmul %66, %67, %cst_21 {dimension_numbers = #tpu.dot_dimension_numbers<[1], [0], [0], [1], [0, 0, 1, 1], [], []>} : vector<16x8xf32>, vector<8x32xf32>, vector<16x32xf32> -> vector<16x32xf32>
    %69 = arith.addf %64, %68 : vector<16x32xf32>
    %70 = vector.extract_strided_slice %53 {offsets = [6, 0, 0], sizes = [2, 8, 8], strides = [1, 1, 1]} : vector<8x8x8xf32> to vector<2x8x8xf32>
    %71 = vector.shape_cast %70 : vector<2x8x8xf32> to vector<16x8xf32>
    %c24 = arith.constant 24 : index
    %c0_22 = arith.constant 0 : index
    %72 = vector.load %arg4[%c24, %c0_22] : memref<32x32xf32, #tpu.memory_space<vmem>>, vector<8x32xf32>
    %cst_23 = arith.constant dense<0.000000e+00> : vector<16x32xf32>
    %73 = tpu.matmul %71, %72, %cst_23 {dimension_numbers = #tpu.dot_dimension_numbers<[1], [0], [0], [1], [0, 0, 1, 1], [], []>} : vector<16x8xf32>, vector<8x32xf32>, vector<16x32xf32> -> vector<16x32xf32>
    %74 = arith.addf %69, %73 : vector<16x32xf32>
    %c0_24 = arith.constant 0 : index
    %c0_25 = arith.constant 0 : index
    %75 = vector.load %arg5[%c0_24, %c0_25] : memref<1x32xf32, #tpu.memory_space<vmem>>, vector<1x32xf32>
    %76 = vector.broadcast %75 : vector<1x32xf32> to vector<16x32xf32>
    %77 = arith.addf %74, %76 : vector<16x32xf32>
    %c0_26 = arith.constant 0 : index
    %c0_27 = arith.constant 0 : index
    %78 = vector.load %arg6[%c0_26, %c0_27] : memref<16x32xf32, #tpu.memory_space<vmem>>, vector<16x32xf32>
    tpu.vector_store %arg6[%c0_26, %c0_27], %77 {strides = array<i32>} : memref<16x32xf32, #tpu.memory_space<vmem>>, vector<16x32xf32>,
    return
  }
}

</mosaic_0001>

<llo_original>
// kernel: tpu_custom_call.1
$region0: #{tpu_custom_call.1}
  #allocation0 [shape = 'u32[]', space=smem, size = 0x4, offset = 0x4, fixed_abs, tag = 'smem constant byte address 0x4 - core index']
  #allocation1 [shape = 'u32[72,128]{1,0:T(1,128)}', space=vmem, size = 0x9000, scoped, tag = 'internal scratch']
  %s0 = inlined_call_operand.hbm [shape: f32[16,32], index: 0, kind: input, shape index: {}]
  %s1 = inlined_call_operand.hbm [shape: f32[32,32], index: 1, kind: input, shape index: {}]
  %s2 = inlined_call_operand.hbm [shape: f32[32,32], index: 2, kind: input, shape index: {}]
  %s3 = inlined_call_operand.hbm [shape: f32[32,32], index: 3, kind: input, shape index: {}]
  %s4 = inlined_call_operand.hbm [shape: f32[32,32], index: 4, kind: input, shape index: {}]
  %s5 = inlined_call_operand.vmem [shape: f32[1,32], index: 5, kind: input, shape index: {}]
  %s6 = inlined_call_operand.hbm [shape: f32[16,32], index: 6, kind: output, shape index: {}]
  %s7 = sld [smem:[#allocation0]]
  $region54: #{tpu_custom_call.1} parent=0
    _
  %s9 = ssub.s32 1, %s7
  %s10 = scalar_select 0, %s9, %s7
  $region1: #{tpu_custom_call.1} parent=0
    #allocation2 [shape = 'u8[8192]{0}', space=vmem, size = 0x2000, scoped, tag = 'input window, operand 0, single buffered']
    #allocation3 [shape = 's32[1]{0}', space=sflag, size = 0x4, scoped, tag = 'scoped memory for tpu_custom_call.1']
    #allocation4 [shape = 's32[1]{0}', space=sflag, size = 0x4, scoped, tag = 'scoped memory for tpu_custom_call.1']
    #allocation5 [shape = 'u8[16384]{0}', space=vmem, size = 0x4000, scoped, tag = 'input window, operand 1, single buffered']
    #allocation6 [shape = 's32[1]{0}', space=sflag, size = 0x4, scoped, tag = 'scoped memory for tpu_custom_call.1']
    #allocation7 [shape = 'u8[16384]{0}', space=vmem, size = 0x4000, scoped, tag = 'input window, operand 2, single buffered']
    #allocation8 [shape = 'u8[16384]{0}', space=vmem, size = 0x4000, scoped, tag = 'input window, operand 3, single buffered']
    #allocation9 [shape = 's32[1]{0}', space=sflag, size = 0x4, scoped, tag = 'scoped memory for tpu_custom_call.1']
    #allocation10 [shape = 'u8[16384]{0}', space=vmem, size = 0x4000, scoped, tag = 'input window, operand 4, single buffered']
    #allocation11 [shape = 'u8[8192]{0}', space=vmem, size = 0x2000, scoped, tag = 'output window, operand 0, single buffered']
    %11 = vsyncpa [#allocation3], 0
    %12 = vsyncpa [#allocation6], 0
    %13 = vsyncpa [#allocation9], 0
    %14 = vsyncpa [#allocation4], 0
    // Predicated region
    $region2: #{tpu_custom_call.1} parent=1 // pred_check
      _
    $region3: #{tpu_custom_call.1} parent=1 // pred_check_branch
      %16 = sbr.rel (0) target = $region5
    $region4: #{tpu_custom_call.1} parent=1 // pred_region
      %18 = vsyncadd [#allocation3], 0
      %s19 = sshll.u32 %s0, 4
      %s20 = int_to_ptr.hbm [resolvable:$true] %s19
      %s21 = sshll.u32 [#allocation2], 4
      %s22 = int_to_ptr.vmem [resolvable:$true] %s21
      %27 = dma.hbm_to_vmem [thread:$0]  %s20, 256, %s22, [#allocation3], 128, 128, 8
    $region5: #{tpu_custom_call.1} parent=1 // pred_fallthru
      _
    // Predicated region
    $region6: #{tpu_custom_call.1} parent=1 // pred_check
      _
    $region7: #{tpu_custom_call.1} parent=1 // pred_check_branch
      %29 = sbr.rel (0) target = $region9
    $region8: #{tpu_custom_call.1} parent=1 // pred_region
      %31 = vsyncadd [#allocation6], 0
      %s32 = sshll.u32 %s1, 4
      %s33 = int_to_ptr.hbm [resolvable:$true] %s32
      %s34 = sshll.u32 [#allocation5], 4
      %s35 = int_to_ptr.vmem [resolvable:$true] %s34
      %40 = dma.hbm_to_vmem [thread:$0]  %s33, 512, %s35, [#allocation6], 128, 128, 8
    $region9: #{tpu_custom_call.1} parent=1 // pred_fallthru
      _
    // Predicated region
    $region10: #{tpu_custom_call.1} parent=1 // pred_check
      _
    $region11: #{tpu_custom_call.1} parent=1 // pred_check_branch
      %42 = sbr.rel (0) target = $region13
    $region12: #{tpu_custom_call.1} parent=1 // pred_region
      %44 = vsyncadd [#allocation6], 0
      %s45 = sshll.u32 %s2, 4
      %s46 = int_to_ptr.hbm [resolvable:$true] %s45
      %s47 = sshll.u32 [#allocation7], 4
      %s48 = int_to_ptr.vmem [resolvable:$true] %s47
      %53 = dma.hbm_to_vmem [thread:$0]  %s46, 512, %s48, [#allocation6], 128, 128, 8
    $region13: #{tpu_custom_call.1} parent=1 // pred_fallthru
      _
    // Predicated region
    $region14: #{tpu_custom_call.1} parent=1 // pred_check
      _
    $region15: #{tpu_custom_call.1} parent=1 // pred_check_branch
      %55 = sbr.rel (0) target = $region17
    $region16: #{tpu_custom_call.1} parent=1 // pred_region
      %57 = vsyncadd [#allocation9], 0
      %s58 = sshll.u32 %s3, 4
      %s59 = int_to_ptr.hbm [resolvable:$true] %s58
      %s60 = sshll.u32 [#allocation8], 4
      %s61 = int_to_ptr.vmem [resolvable:$true] %s60
      %66 = dma.hbm_to_vmem [thread:$0]  %s59, 512, %s61, [#allocation9], 128, 128, 8
    $region17: #{tpu_custom_call.1} parent=1 // pred_fallthru
      _
    // Predicated region
    $region18: #{tpu_custom_call.1} parent=1 // pred_check
      _
    $region19: #{tpu_custom_call.1} parent=1 // pred_check_branch
      %68 = sbr.rel (0) target = $region21
    $region20: #{tpu_custom_call.1} parent=1 // pred_region
      %70 = vsyncadd [#allocation9], 0
      %s71 = sshll.u32 %s4, 4
      %s72 = int_to_ptr.hbm [resolvable:$true] %s71
      %s73 = sshll.u32 [#allocation10], 4
      %s74 = int_to_ptr.vmem [resolvable:$true] %s73
      %79 = dma.hbm_to_vmem [thread:$0]  %s72, 512, %s74, [#allocation9], 128, 128, 8
    $region21: #{tpu_custom_call.1} parent=1 // pred_fallthru
      _
    // Predicated region
    $region22: #{tpu_custom_call.1} parent=1 // pred_check
      _
    $region23: #{tpu_custom_call.1} parent=1 // pred_check_branch
      %81 = sbr.rel (0) target = $region25
    $region24: #{tpu_custom_call.1} parent=1 // pred_region
      _
    $region25: #{tpu_custom_call.1} parent=1 // pred_fallthru
      _
    // Predicated region
    $region26: #{tpu_custom_call.1} parent=1 // pred_check
      _
    $region27: #{tpu_custom_call.1} parent=1 // pred_check_branch
      %83 = sbr.rel (0) target = $region29
    $region28: #{tpu_custom_call.1} parent=1 // pred_region
      %85 = dma.done [#allocation3], 256
    $region29: #{tpu_custom_call.1} parent=1 // pred_fallthru
      _
    // Predicated region
    $region30: #{tpu_custom_call.1} parent=1 // pred_check
      _
    $region31: #{tpu_custom_call.1} parent=1 // pred_check_branch
      %87 = sbr.rel (0) target = $region33
    $region32: #{tpu_custom_call.1} parent=1 // pred_region
      %89 = dma.done [#allocation6], 512
    $region33: #{tpu_custom_call.1} parent=1 // pred_fallthru
      _
    // Predicated region
    $region34: #{tpu_custom_call.1} parent=1 // pred_check
      _
    $region35: #{tpu_custom_call.1} parent=1 // pred_check_branch
      %91 = sbr.rel (0) target = $region37
    $region36: #{tpu_custom_call.1} parent=1 // pred_region
      %93 = dma.done [#allocation6], 512
    $region37: #{tpu_custom_call.1} parent=1 // pred_fallthru
      _
    // Predicated region
    $region38: #{tpu_custom_call.1} parent=1 // pred_check
      _
    $region39: #{tpu_custom_call.1} parent=1 // pred_check_branch
      %95 = sbr.rel (0) target = $region41
    $region40: #{tpu_custom_call.1} parent=1 // pred_region
      %97 = dma.done [#allocation9], 512
    $region41: #{tpu_custom_call.1} parent=1 // pred_fallthru
      _
    // Predicated region
    $region42: #{tpu_custom_call.1} parent=1 // pred_check
      _
    $region43: #{tpu_custom_call.1} parent=1 // pred_check_branch
      %99 = sbr.rel (0) target = $region45
    $region44: #{tpu_custom_call.1} parent=1 // pred_region
      %101 = dma.done [#allocation9], 512
    $region45: #{tpu_custom_call.1} parent=1 // pred_fallthru
      _
    %v102 = vld [vmem:[#allocation2] sm:$0xff]
    %v103 = vld [vmem:[#allocation2 + $0x8] sm:$0xff]
    %v104 = vld [vmem:[#allocation5] sm:$0xff]
    %v105 = vld [vmem:[#allocation5 + $0x8] sm:$0xff]
    %v106 = vld [vmem:[#allocation5 + $0x10] sm:$0xff]
    %v107 = vld [vmem:[#allocation5 + $0x18] sm:$0xff]
    %vm108 = vcmask 261120
    %v110 = vsel %vm108, %v102, 0
    %v113 = vsel %vm108, %v103, 0
    %115 = vmatpush.msra.mxu0 0.0
    %116 = vmatpush.msra.mxu0 0.0
    %117 = vmatpush.msra.mxu0 0.0
    %118 = vmatpush.msra.mxu0 0.0
    %119 = vmatpush.msra.mxu0 0.0
    %120 = vmatpush.msra.mxu0 0.0
    %121 = vmatpush.msra.mxu0 0.0
    %122 = vmatpush.msra.mxu0 0.0
    %123 = vmatpush.msra.mxu0 0.0
    %124 = vmatpush.msra.mxu0 0.0
    %125 = vmatpush.msra.mxu0 0.0
    %126 = vmatpush.msra.mxu0 0.0
    %127 = vmatpush.msra.mxu0 %v107
    %128 = vmatpush.msra.mxu0 %v106
    %129 = vmatpush.msra.mxu0 %v105
    %130 = vmatpush.msra.mxu0 %v104
    %131 = vmatmul.f32.gmra.mxu0 %v110
    %v132 = vpop.f32.mrf.mxu0
    %v133 = vadd.f32 0.0, %v132
    %134 = vmatmul.f32.gmra.mxu0 %v113
    %v135 = vpop.f32.mrf.mxu0
    %v136 = vadd.f32 0.0, %v135
    %137 = vdwg.mxu0
    %v138 = vld [vmem:[#allocation7] sm:$0xff]
    %v139 = vld [vmem:[#allocation7 + $0x8] sm:$0xff]
    %v140 = vld [vmem:[#allocation7 + $0x10] sm:$0xff]
    %v141 = vld [vmem:[#allocation7 + $0x18] sm:$0xff]
    %142 = vmatpush.msra.mxu0 0.0
    %143 = vmatpush.msra.mxu0 0.0
    %144 = vmatpush.msra.mxu0 0.0
    %145 = vmatpush.msra.mxu0 0.0
    %146 = vmatpush.msra.mxu0 0.0
    %147 = vmatpush.msra.mxu0 0.0
    %148 = vmatpush.msra.mxu0 0.0
    %149 = vmatpush.msra.mxu0 0.0
    %150 = vmatpush.msra.mxu0 0.0
    %151 = vmatpush.msra.mxu0 0.0
    %152 = vmatpush.msra.mxu0 0.0
    %153 = vmatpush.msra.mxu0 0.0
    %154 = vmatpush.msra.mxu0 %v141
    %155 = vmatpush.msra.mxu0 %v140
    %156 = vmatpush.msra.mxu0 %v139
    %157 = vmatpush.msra.mxu0 %v138
    %158 = vmatmul.f32.gmra.mxu0 %v110
    %v159 = vpop.f32.mrf.mxu0
    %v160 = vadd.f32 0.0, %v159
    %161 = vmatmul.f32.gmra.mxu0 %v113
    %v162 = vpop.f32.mrf.mxu0
    %v163 = vadd.f32 0.0, %v162
    %164 = vdwg.mxu0
    %v165 = vld [vmem:[#allocation8] sm:$0xff]
    %v166 = vld [vmem:[#allocation8 + $0x8] sm:$0xff]
    %v167 = vld [vmem:[#allocation8 + $0x10] sm:$0xff]
    %v168 = vld [vmem:[#allocation8 + $0x18] sm:$0xff]
    %169 = vmatpush.msra.mxu0 0.0
    %170 = vmatpush.msra.mxu0 0.0
    %171 = vmatpush.msra.mxu0 0.0
    %172 = vmatpush.msra.mxu0 0.0
    %173 = vmatpush.msra.mxu0 0.0
    %174 = vmatpush.msra.mxu0 0.0
    %175 = vmatpush.msra.mxu0 0.0
    %176 = vmatpush.msra.mxu0 0.0
    %177 = vmatpush.msra.mxu0 0.0
    %178 = vmatpush.msra.mxu0 0.0
    %179 = vmatpush.msra.mxu0 0.0
    %180 = vmatpush.msra.mxu0 0.0
    %181 = vmatpush.msra.mxu0 %v168
    %182 = vmatpush.msra.mxu0 %v167
    %183 = vmatpush.msra.mxu0 %v166
    %184 = vmatpush.msra.mxu0 %v165
    %185 = vmatmul.f32.gmra.mxu0 %v110
    %v186 = vpop.f32.mrf.mxu0
    %v187 = vadd.f32 0.0, %v186
    %188 = vmatmul.f32.gmra.mxu0 %v113
    %v189 = vpop.f32.mrf.mxu0
    %v190 = vadd.f32 0.0, %v189
    %191 = vdwg.mxu0
    %194 = vrot.lane.b32.xlu0 %v133, 120
    %v195 = vpop.permute.xlu0 %194
    %196 = vrot.lane.b32.xlu0 %v136, 120
    %v197 = vpop.permute.xlu0 %196
    %198 = vrot.lane.b32.xlu0 %v133, 112
    %v199 = vpop.permute.xlu0 %198
    %200 = vrot.lane.b32.xlu0 %v136, 112
    %v201 = vpop.permute.xlu0 %200
    %202 = vrot.lane.b32.xlu0 %v133, 104
    %v203 = vpop.permute.xlu0 %202
    %204 = vrot.lane.b32.xlu0 %v136, 104
    %v205 = vpop.permute.xlu0 %204
    %208 = vrot.lane.b32.xlu0 %v160, 120
    %v209 = vpop.permute.xlu0 %208
    %210 = vrot.lane.b32.xlu0 %v163, 120
    %v211 = vpop.permute.xlu0 %210
    %212 = vrot.lane.b32.xlu0 %v160, 112
    %v213 = vpop.permute.xlu0 %212
    %214 = vrot.lane.b32.xlu0 %v163, 112
    %v215 = vpop.permute.xlu0 %214
    %216 = vrot.lane.b32.xlu0 %v160, 104
    %v217 = vpop.permute.xlu0 %216
    %218 = vrot.lane.b32.xlu0 %v163, 104
    %v219 = vpop.permute.xlu0 %218
    %222 = vrot.lane.b32.xlu0 %v187, 120
    %v223 = vpop.permute.xlu0 %222
    %224 = vrot.lane.b32.xlu0 %v190, 120
    %v225 = vpop.permute.xlu0 %224
    %228 = vrot.lane.b32.xlu0 %v187, 112
    %v229 = vpop.permute.xlu0 %228
    %230 = vrot.lane.b32.xlu0 %v190, 112
    %v231 = vpop.permute.xlu0 %230
    %234 = vrot.lane.b32.xlu0 %v187, 104
    %v235 = vpop.permute.xlu0 %234
    %236 = vrot.lane.b32.xlu0 %v190, 104
    %v237 = vpop.permute.xlu0 %236
    %vm240 = vcmask 64512
    %v241 = vsel %vm240, %v133, 0
    %v243 = vsel %vm240, %v160, 0
    %245 = vmatpush.xpose.msra.mxu0 0.0
    %246 = vmatpush.xpose.msra.mxu0 0.0
    %247 = vmatpush.xpose.msra.mxu0 0.0
    %248 = vmatpush.xpose.msra.mxu0 0.0
    %249 = vmatpush.xpose.msra.mxu0 0.0
    %250 = vmatpush.xpose.msra.mxu0 0.0
    %251 = vmatpush.xpose.msra.mxu0 0.0
    %252 = vmatpush.xpose.msra.mxu0 0.0
    %253 = vmatpush.xpose.msra.mxu0 0.0
    %254 = vmatpush.xpose.msra.mxu0 0.0
    %255 = vmatpush.xpose.msra.mxu0 0.0
    %256 = vmatpush.xpose.msra.mxu0 0.0
    %257 = vmatpush.xpose.msra.mxu0 0.0
    %258 = vmatpush.xpose.msra.mxu0 0.0
    %259 = vmatpush.xpose.msra.mxu0 0.0
    %260 = vmatpush.xpose.msra.mxu0 %v243
    %261 = vmatmul.f32.gmra.mxu0 %v241
    %v262 = vpop.f32.mrf.mxu0
    %v263 = vadd.f32 0.0, %v262
    %264 = vdwg.mxu0
    %v265 = vsel %vm240, %v136, 0
    %v267 = vsel %vm240, %v163, 0
    %269 = vmatpush.xpose.msra.mxu0 0.0
    %270 = vmatpush.xpose.msra.mxu0 0.0
    %271 = vmatpush.xpose.msra.mxu0 0.0
    %272 = vmatpush.xpose.msra.mxu0 0.0
    %273 = vmatpush.xpose.msra.mxu0 0.0
    %274 = vmatpush.xpose.msra.mxu0 0.0
    %275 = vmatpush.xpose.msra.mxu0 0.0
    %276 = vmatpush.xpose.msra.mxu0 0.0
    %277 = vmatpush.xpose.msra.mxu0 0.0
    %278 = vmatpush.xpose.msra.mxu0 0.0
    %279 = vmatpush.xpose.msra.mxu0 0.0
    %280 = vmatpush.xpose.msra.mxu0 0.0
    %281 = vmatpush.xpose.msra.mxu0 0.0
    %282 = vmatpush.xpose.msra.mxu0 0.0
    %283 = vmatpush.xpose.msra.mxu0 0.0
    %284 = vmatpush.xpose.msra.mxu0 %v267
    %285 = vmatmul.f32.gmra.mxu0 %v265
    %v286 = vpop.f32.mrf.mxu0
    %v287 = vadd.f32 0.0, %v286
    %288 = vdwg.mxu0
    %v289 = vsel %vm240, %v195, 0
    %v291 = vsel %vm240, %v209, 0
    %293 = vmatpush.xpose.msra.mxu0 0.0
    %294 = vmatpush.xpose.msra.mxu0 0.0
    %295 = vmatpush.xpose.msra.mxu0 0.0
    %296 = vmatpush.xpose.msra.mxu0 0.0
    %297 = vmatpush.xpose.msra.mxu0 0.0
    %298 = vmatpush.xpose.msra.mxu0 0.0
    %299 = vmatpush.xpose.msra.mxu0 0.0
    %300 = vmatpush.xpose.msra.mxu0 0.0
    %301 = vmatpush.xpose.msra.mxu0 0.0
    %302 = vmatpush.xpose.msra.mxu0 0.0
    %303 = vmatpush.xpose.msra.mxu0 0.0
    %304 = vmatpush.xpose.msra.mxu0 0.0
    %305 = vmatpush.xpose.msra.mxu0 0.0
    %306 = vmatpush.xpose.msra.mxu0 0.0
    %307 = vmatpush.xpose.msra.mxu0 0.0
    %308 = vmatpush.xpose.msra.mxu0 %v291
    %309 = vmatmul.f32.gmra.mxu0 %v289
    %v310 = vpop.f32.mrf.mxu0
    %v311 = vadd.f32 0.0, %v310
    %312 = vdwg.mxu0
    %v313 = vsel %vm240, %v197, 0
    %v315 = vsel %vm240, %v211, 0
    %317 = vmatpush.xpose.msra.mxu0 0.0
    %318 = vmatpush.xpose.msra.mxu0 0.0
    %319 = vmatpush.xpose.msra.mxu0 0.0
    %320 = vmatpush.xpose.msra.mxu0 0.0
    %321 = vmatpush.xpose.msra.mxu0 0.0
    %322 = vmatpush.xpose.msra.mxu0 0.0
    %323 = vmatpush.xpose.msra.mxu0 0.0
    %324 = vmatpush.xpose.msra.mxu0 0.0
    %325 = vmatpush.xpose.msra.mxu0 0.0
    %326 = vmatpush.xpose.msra.mxu0 0.0
    %327 = vmatpush.xpose.msra.mxu0 0.0
    %328 = vmatpush.xpose.msra.mxu0 0.0
    %329 = vmatpush.xpose.msra.mxu0 0.0
    %330 = vmatpush.xpose.msra.mxu0 0.0
    %331 = vmatpush.xpose.msra.mxu0 0.0
    %332 = vmatpush.xpose.msra.mxu0 %v315
    %333 = vmatmul.f32.gmra.mxu0 %v313
    %v334 = vpop.f32.mrf.mxu0
    %v335 = vadd.f32 0.0, %v334
    %336 = vdwg.mxu0
    %v337 = vsel %vm240, %v199, 0
    %v339 = vsel %vm240, %v213, 0
    %341 = vmatpush.xpose.msra.mxu0 0.0
    %342 = vmatpush.xpose.msra.mxu0 0.0
    %343 = vmatpush.xpose.msra.mxu0 0.0
    %344 = vmatpush.xpose.msra.mxu0 0.0
    %345 = vmatpush.xpose.msra.mxu0 0.0
    %346 = vmatpush.xpose.msra.mxu0 0.0
    %347 = vmatpush.xpose.msra.mxu0 0.0
    %348 = vmatpush.xpose.msra.mxu0 0.0
    %349 = vmatpush.xpose.msra.mxu0 0.0
    %350 = vmatpush.xpose.msra.mxu0 0.0
    %351 = vmatpush.xpose.msra.mxu0 0.0
    %352 = vmatpush.xpose.msra.mxu0 0.0
    %353 = vmatpush.xpose.msra.mxu0 0.0
    %354 = vmatpush.xpose.msra.mxu0 0.0
    %355 = vmatpush.xpose.msra.mxu0 0.0
    %356 = vmatpush.xpose.msra.mxu0 %v339
    %357 = vmatmul.f32.gmra.mxu0 %v337
    %v358 = vpop.f32.mrf.mxu0
    %v359 = vadd.f32 0.0, %v358
    %360 = vdwg.mxu0
    %v361 = vsel %vm240, %v201, 0
    %v363 = vsel %vm240, %v215, 0
    %365 = vmatpush.xpose.msra.mxu0 0.0
    %366 = vmatpush.xpose.msra.mxu0 0.0
    %367 = vmatpush.xpose.msra.mxu0 0.0
    %368 = vmatpush.xpose.msra.mxu0 0.0
    %369 = vmatpush.xpose.msra.mxu0 0.0
    %370 = vmatpush.xpose.msra.mxu0 0.0
    %371 = vmatpush.xpose.msra.mxu0 0.0
    %372 = vmatpush.xpose.msra.mxu0 0.0
    %373 = vmatpush.xpose.msra.mxu0 0.0
    %374 = vmatpush.xpose.msra.mxu0 0.0
    %375 = vmatpush.xpose.msra.mxu0 0.0
    %376 = vmatpush.xpose.msra.mxu0 0.0
    %377 = vmatpush.xpose.msra.mxu0 0.0
    %378 = vmatpush.xpose.msra.mxu0 0.0
    %379 = vmatpush.xpose.msra.mxu0 0.0
    %380 = vmatpush.xpose.msra.mxu0 %v363
    %381 = vmatmul.f32.gmra.mxu0 %v361
    %v382 = vpop.f32.mrf.mxu0
    %v383 = vadd.f32 0.0, %v382
    %384 = vdwg.mxu0
    %v385 = vsel %vm240, %v203, 0
    %v387 = vsel %vm240, %v217, 0
    %389 = vmatpush.xpose.msra.mxu0 0.0
    %390 = vmatpush.xpose.msra.mxu0 0.0
    %391 = vmatpush.xpose.msra.mxu0 0.0
    %392 = vmatpush.xpose.msra.mxu0 0.0
    %393 = vmatpush.xpose.msra.mxu0 0.0
    %394 = vmatpush.xpose.msra.mxu0 0.0
    %395 = vmatpush.xpose.msra.mxu0 0.0
    %396 = vmatpush.xpose.msra.mxu0 0.0
    %397 = vmatpush.xpose.msra.mxu0 0.0
    %398 = vmatpush.xpose.msra.mxu0 0.0
    %399 = vmatpush.xpose.msra.mxu0 0.0
    %400 = vmatpush.xpose.msra.mxu0 0.0
    %401 = vmatpush.xpose.msra.mxu0 0.0
    %402 = vmatpush.xpose.msra.mxu0 0.0
    %403 = vmatpush.xpose.msra.mxu0 0.0
    %404 = vmatpush.xpose.msra.mxu0 %v387
    %405 = vmatmul.f32.gmra.mxu0 %v385
    %v406 = vpop.f32.mrf.mxu0
    %v407 = vadd.f32 0.0, %v406
    %408 = vdwg.mxu0
    %v409 = vsel %vm240, %v205, 0
    %v411 = vsel %vm240, %v219, 0
    %413 = vmatpush.xpose.msra.mxu0 0.0
    %414 = vmatpush.xpose.msra.mxu0 0.0
    %415 = vmatpush.xpose.msra.mxu0 0.0
    %416 = vmatpush.xpose.msra.mxu0 0.0
    %417 = vmatpush.xpose.msra.mxu0 0.0
    %418 = vmatpush.xpose.msra.mxu0 0.0
    %419 = vmatpush.xpose.msra.mxu0 0.0
    %420 = vmatpush.xpose.msra.mxu0 0.0
    %421 = vmatpush.xpose.msra.mxu0 0.0
    %422 = vmatpush.xpose.msra.mxu0 0.0
    %423 = vmatpush.xpose.msra.mxu0 0.0
    %424 = vmatpush.xpose.msra.mxu0 0.0
    %425 = vmatpush.xpose.msra.mxu0 0.0
    %426 = vmatpush.xpose.msra.mxu0 0.0
    %427 = vmatpush.xpose.msra.mxu0 0.0
    %428 = vmatpush.xpose.msra.mxu0 %v411
    %429 = vmatmul.f32.gmra.mxu0 %v409
    %v430 = vpop.f32.mrf.mxu0
    %v431 = vadd.f32 0.0, %v430
    %432 = vdwg.mxu0
    %v433 = vlaneseq
    %v434 = vshrl.u32 %v433, 7
    %v435 = vlaneseq
    %v436 = vand.u32 %v435, 127
    %vm437 = vcmp.ge.s32.totalorder %v434, %v436
    %v438 = vsel %vm437, 1, 0
    %vm439 = vcmp.eq.s32.totalorder %v438, 1
    %v440 = vsel %vm439, %v263, -1e+30
    %v441 = vsel %vm439, %v287, -1e+30
    %v442 = vsel %vm439, %v311, -1e+30
    %v443 = vsel %vm439, %v335, -1e+30
    %v444 = vsel %vm439, %v359, -1e+30
    %v445 = vsel %vm439, %v383, -1e+30
    %v446 = vsel %vm439, %v407, -1e+30
    %v447 = vsel %vm439, %v431, -1e+30
    %v448 = vsel %vm240, %v440, -inf
    %449 = vmax.xlane.f32.xlu0 %v448
    %v450 = vpop.xlane.xlu0 %449
    %v451 = vsel %vm240, %v441, -inf
    %452 = vmax.xlane.f32.xlu0 %v451
    %v453 = vpop.xlane.xlu0 %452
    %v454 = vsel %vm240, %v442, -inf
    %455 = vmax.xlane.f32.xlu0 %v454
    %v456 = vpop.xlane.xlu0 %455
    %v457 = vsel %vm240, %v443, -inf
    %458 = vmax.xlane.f32.xlu0 %v457
    %v459 = vpop.xlane.xlu0 %458
    %v460 = vsel %vm240, %v444, -inf
    %461 = vmax.xlane.f32.xlu0 %v460
    %v462 = vpop.xlane.xlu0 %461
    %v463 = vsel %vm240, %v445, -inf
    %464 = vmax.xlane.f32.xlu0 %v463
    %v465 = vpop.xlane.xlu0 %464
    %v466 = vsel %vm240, %v446, -inf
    %467 = vmax.xlane.f32.xlu0 %v466
    %v468 = vpop.xlane.xlu0 %467
    %v469 = vsel %vm240, %v447, -inf
    %470 = vmax.xlane.f32.xlu0 %v469
    %v471 = vpop.xlane.xlu0 %470
    %v472 = vsub.f32 %v440, %v450
    %v473 = vsub.f32 %v441, %v453
    %v474 = vsub.f32 %v442, %v456
    %v475 = vsub.f32 %v443, %v459
    %v476 = vsub.f32 %v444, %v462
    %v477 = vsub.f32 %v445, %v465
    %v478 = vsub.f32 %v446, %v468
    %v479 = vsub.f32 %v447, %v471
    %v480 = vmul.f32 %v472, 1.442695
    %v481 = vpow.pop %v480
    %v482 = vmul.f32 %v473, 1.442695
    %v483 = vpow.pop %v482
    %v484 = vmul.f32 %v474, 1.442695
    %v485 = vpow.pop %v484
    %v486 = vmul.f32 %v475, 1.442695
    %v487 = vpow.pop %v486
    %v488 = vmul.f32 %v476, 1.442695
    %v489 = vpow.pop %v488
    %v490 = vmul.f32 %v477, 1.442695
    %v491 = vpow.pop %v490
    %v492 = vmul.f32 %v478, 1.442695
    %v493 = vpow.pop %v492
    %v494 = vmul.f32 %v479, 1.442695
    %v495 = vpow.pop %v494
    %v496 = vsel %vm240, %v481, 0.0
    %497 = vadd.xlane.f32.xlu0 %v496
    %v498 = vpop.xlane.xlu0 %497
    %v499 = vsel %vm240, %v483, 0.0
    %500 = vadd.xlane.f32.xlu0 %v499
    %v501 = vpop.xlane.xlu0 %500
    %v502 = vsel %vm240, %v485, 0.0
    %503 = vadd.xlane.f32.xlu0 %v502
    %v504 = vpop.xlane.xlu0 %503
    %v505 = vsel %vm240, %v487, 0.0
    %506 = vadd.xlane.f32.xlu0 %v505
    %v507 = vpop.xlane.xlu0 %506
    %v508 = vsel %vm240, %v489, 0.0
    %509 = vadd.xlane.f32.xlu0 %v508
    %v510 = vpop.xlane.xlu0 %509
    %v511 = vsel %vm240, %v491, 0.0
    %512 = vadd.xlane.f32.xlu0 %v511
    %v513 = vpop.xlane.xlu0 %512
    %v514 = vsel %vm240, %v493, 0.0
    %515 = vadd.xlane.f32.xlu0 %v514
    %v516 = vpop.xlane.xlu0 %515
    %v517 = vsel %vm240, %v495, 0.0
    %518 = vadd.xlane.f32.xlu0 %v517
    %v519 = vpop.xlane.xlu0 %518
    %v520 = vrcp.pop %v498
    %v521 = vrcp.pop %v501
    %v522 = vrcp.pop %v504
    %v523 = vrcp.pop %v507
    %v524 = vrcp.pop %v510
    %v525 = vrcp.pop %v513
    %v526 = vrcp.pop %v516
    %v527 = vrcp.pop %v519
    %v528 = vmul.f32 %v481, %v520
    %v529 = vmul.f32 %v483, %v521
    %v530 = vmul.f32 %v485, %v522
    %v531 = vmul.f32 %v487, %v523
    %v532 = vmul.f32 %v489, %v524
    %v533 = vmul.f32 %v491, %v525
    %v534 = vmul.f32 %v493, %v526
    %v535 = vmul.f32 %v495, %v527
    %v537 = vsel %vm240, %v528, 0
    %539 = vmatpush.msra.mxu0 0.0
    %540 = vmatpush.msra.mxu0 0.0
    %541 = vmatpush.msra.mxu0 0.0
    %542 = vmatpush.msra.mxu0 0.0
    %543 = vmatpush.msra.mxu0 0.0
    %544 = vmatpush.msra.mxu0 0.0
    %545 = vmatpush.msra.mxu0 0.0
    %546 = vmatpush.msra.mxu0 0.0
    %547 = vmatpush.msra.mxu0 0.0
    %548 = vmatpush.msra.mxu0 0.0
    %549 = vmatpush.msra.mxu0 0.0
    %550 = vmatpush.msra.mxu0 0.0
    %551 = vmatpush.msra.mxu0 0.0
    %552 = vmatpush.msra.mxu0 0.0
    %553 = vmatpush.msra.mxu0 0.0
    %554 = vmatpush.msra.mxu0 %v187
    %555 = vmatmul.f32.gmra.mxu0 %v537
    %v556 = vpop.f32.mrf.mxu0
    %v557 = vadd.f32 0.0, %v556
    %558 = vdwg.mxu0
    %v560 = vsel %vm240, %v529, 0
    %562 = vmatpush.msra.mxu0 0.0
    %563 = vmatpush.msra.mxu0 0.0
    %564 = vmatpush.msra.mxu0 0.0
    %565 = vmatpush.msra.mxu0 0.0
    %566 = vmatpush.msra.mxu0 0.0
    %567 = vmatpush.msra.mxu0 0.0
    %568 = vmatpush.msra.mxu0 0.0
    %569 = vmatpush.msra.mxu0 0.0
    %570 = vmatpush.msra.mxu0 0.0
    %571 = vmatpush.msra.mxu0 0.0
    %572 = vmatpush.msra.mxu0 0.0
    %573 = vmatpush.msra.mxu0 0.0
    %574 = vmatpush.msra.mxu0 0.0
    %575 = vmatpush.msra.mxu0 0.0
    %576 = vmatpush.msra.mxu0 0.0
    %577 = vmatpush.msra.mxu0 %v190
    %578 = vmatmul.f32.gmra.mxu0 %v560
    %v579 = vpop.f32.mrf.mxu0
    %v580 = vadd.f32 0.0, %v579
    %581 = vdwg.mxu0
    %v583 = vsel %vm240, %v530, 0
    %585 = vmatpush.msra.mxu0 0.0
    %586 = vmatpush.msra.mxu0 0.0
    %587 = vmatpush.msra.mxu0 0.0
    %588 = vmatpush.msra.mxu0 0.0
    %589 = vmatpush.msra.mxu0 0.0
    %590 = vmatpush.msra.mxu0 0.0
    %591 = vmatpush.msra.mxu0 0.0
    %592 = vmatpush.msra.mxu0 0.0
    %593 = vmatpush.msra.mxu0 0.0
    %594 = vmatpush.msra.mxu0 0.0
    %595 = vmatpush.msra.mxu0 0.0
    %596 = vmatpush.msra.mxu0 0.0
    %597 = vmatpush.msra.mxu0 0.0
    %598 = vmatpush.msra.mxu0 0.0
    %599 = vmatpush.msra.mxu0 0.0
    %600 = vmatpush.msra.mxu0 %v223
    %601 = vmatmul.f32.gmra.mxu0 %v583
    %v602 = vpop.f32.mrf.mxu0
    %v603 = vadd.f32 0.0, %v602
    %604 = vdwg.mxu0
    %v606 = vsel %vm240, %v531, 0
    %608 = vmatpush.msra.mxu0 0.0
    %609 = vmatpush.msra.mxu0 0.0
    %610 = vmatpush.msra.mxu0 0.0
    %611 = vmatpush.msra.mxu0 0.0
    %612 = vmatpush.msra.mxu0 0.0
    %613 = vmatpush.msra.mxu0 0.0
    %614 = vmatpush.msra.mxu0 0.0
    %615 = vmatpush.msra.mxu0 0.0
    %616 = vmatpush.msra.mxu0 0.0
    %617 = vmatpush.msra.mxu0 0.0
    %618 = vmatpush.msra.mxu0 0.0
    %619 = vmatpush.msra.mxu0 0.0
    %620 = vmatpush.msra.mxu0 0.0
    %621 = vmatpush.msra.mxu0 0.0
    %622 = vmatpush.msra.mxu0 0.0
    %623 = vmatpush.msra.mxu0 %v225
    %624 = vmatmul.f32.gmra.mxu0 %v606
    %v625 = vpop.f32.mrf.mxu0
    %v626 = vadd.f32 0.0, %v625
    %627 = vdwg.mxu0
    %v629 = vsel %vm240, %v532, 0
    %631 = vmatpush.msra.mxu0 0.0
    %632 = vmatpush.msra.mxu0 0.0
    %633 = vmatpush.msra.mxu0 0.0
    %634 = vmatpush.msra.mxu0 0.0
    %635 = vmatpush.msra.mxu0 0.0
    %636 = vmatpush.msra.mxu0 0.0
    %637 = vmatpush.msra.mxu0 0.0
    %638 = vmatpush.msra.mxu0 0.0
    %639 = vmatpush.msra.mxu0 0.0
    %640 = vmatpush.msra.mxu0 0.0
    %641 = vmatpush.msra.mxu0 0.0
    %642 = vmatpush.msra.mxu0 0.0
    %643 = vmatpush.msra.mxu0 0.0
    %644 = vmatpush.msra.mxu0 0.0
    %645 = vmatpush.msra.mxu0 0.0
    %646 = vmatpush.msra.mxu0 %v229
    %647 = vmatmul.f32.gmra.mxu0 %v629
    %v648 = vpop.f32.mrf.mxu0
    %v649 = vadd.f32 0.0, %v648
    %650 = vdwg.mxu0
    %v652 = vsel %vm240, %v533, 0
    %654 = vmatpush.msra.mxu0 0.0
    %655 = vmatpush.msra.mxu0 0.0
    %656 = vmatpush.msra.mxu0 0.0
    %657 = vmatpush.msra.mxu0 0.0
    %658 = vmatpush.msra.mxu0 0.0
    %659 = vmatpush.msra.mxu0 0.0
    %660 = vmatpush.msra.mxu0 0.0
    %661 = vmatpush.msra.mxu0 0.0
    %662 = vmatpush.msra.mxu0 0.0
    %663 = vmatpush.msra.mxu0 0.0
    %664 = vmatpush.msra.mxu0 0.0
    %665 = vmatpush.msra.mxu0 0.0
    %666 = vmatpush.msra.mxu0 0.0
    %667 = vmatpush.msra.mxu0 0.0
    %668 = vmatpush.msra.mxu0 0.0
    %669 = vmatpush.msra.mxu0 %v231
    %670 = vmatmul.f32.gmra.mxu0 %v652
    %v671 = vpop.f32.mrf.mxu0
    %v672 = vadd.f32 0.0, %v671
    %673 = vdwg.mxu0
    %v675 = vsel %vm240, %v534, 0
    %677 = vmatpush.msra.mxu0 0.0
    %678 = vmatpush.msra.mxu0 0.0
    %679 = vmatpush.msra.mxu0 0.0
    %680 = vmatpush.msra.mxu0 0.0
    %681 = vmatpush.msra.mxu0 0.0
    %682 = vmatpush.msra.mxu0 0.0
    %683 = vmatpush.msra.mxu0 0.0
    %684 = vmatpush.msra.mxu0 0.0
    %685 = vmatpush.msra.mxu0 0.0
    %686 = vmatpush.msra.mxu0 0.0
    %687 = vmatpush.msra.mxu0 0.0
    %688 = vmatpush.msra.mxu0 0.0
    %689 = vmatpush.msra.mxu0 0.0
    %690 = vmatpush.msra.mxu0 0.0
    %691 = vmatpush.msra.mxu0 0.0
    %692 = vmatpush.msra.mxu0 %v235
    %693 = vmatmul.f32.gmra.mxu0 %v675
    %v694 = vpop.f32.mrf.mxu0
    %v695 = vadd.f32 0.0, %v694
    %696 = vdwg.mxu0
    %v698 = vsel %vm240, %v535, 0
    %700 = vmatpush.msra.mxu0 0.0
    %701 = vmatpush.msra.mxu0 0.0
    %702 = vmatpush.msra.mxu0 0.0
    %703 = vmatpush.msra.mxu0 0.0
    %704 = vmatpush.msra.mxu0 0.0
    %705 = vmatpush.msra.mxu0 0.0
    %706 = vmatpush.msra.mxu0 0.0
    %707 = vmatpush.msra.mxu0 0.0
    %708 = vmatpush.msra.mxu0 0.0
    %709 = vmatpush.msra.mxu0 0.0
    %710 = vmatpush.msra.mxu0 0.0
    %711 = vmatpush.msra.mxu0 0.0
    %712 = vmatpush.msra.mxu0 0.0
    %713 = vmatpush.msra.mxu0 0.0
    %714 = vmatpush.msra.mxu0 0.0
    %715 = vmatpush.msra.mxu0 %v237
    %716 = vmatmul.f32.gmra.mxu0 %v698
    %v717 = vpop.f32.mrf.mxu0
    %v718 = vadd.f32 0.0, %v717
    %719 = vdwg.mxu0
    %v720 = vld [vmem:[#allocation10] sm:$0xff]
    %v721 = vld [vmem:[#allocation10 + $0x8] sm:$0xff]
    %v723 = vsel %vm240, %v603, 0
    %v726 = vsel %vm240, %v626, 0
    %728 = vmatpush.msra.mxu0 0.0
    %729 = vmatpush.msra.mxu0 0.0
    %730 = vmatpush.msra.mxu0 0.0
    %731 = vmatpush.msra.mxu0 0.0
    %732 = vmatpush.msra.mxu0 0.0
    %733 = vmatpush.msra.mxu0 0.0
    %734 = vmatpush.msra.mxu0 0.0
    %735 = vmatpush.msra.mxu0 0.0
    %736 = vmatpush.msra.mxu0 0.0
    %737 = vmatpush.msra.mxu0 0.0
    %738 = vmatpush.msra.mxu0 0.0
    %739 = vmatpush.msra.mxu0 0.0
    %740 = vmatpush.msra.mxu0 0.0
    %741 = vmatpush.msra.mxu0 0.0
    %742 = vmatpush.msra.mxu0 0.0
    %743 = vmatpush.msra.mxu0 %v721
    %744 = vmatmul.f32.gmra.mxu0 %v723
    %v745 = vpop.f32.mrf.mxu0
    %v746 = vadd.f32 0.0, %v745
    %747 = vmatmul.f32.gmra.mxu0 %v726
    %v748 = vpop.f32.mrf.mxu0
    %v749 = vadd.f32 0.0, %v748
    %750 = vdwg.mxu0
    %v752 = vsel %vm240, %v557, 0
    %v755 = vsel %vm240, %v580, 0
    %757 = vmatpush.msra.mxu0 0.0
    %758 = vmatpush.msra.mxu0 0.0
    %759 = vmatpush.msra.mxu0 0.0
    %760 = vmatpush.msra.mxu0 0.0
    %761 = vmatpush.msra.mxu0 0.0
    %762 = vmatpush.msra.mxu0 0.0
    %763 = vmatpush.msra.mxu0 0.0
    %764 = vmatpush.msra.mxu0 0.0
    %765 = vmatpush.msra.mxu0 0.0
    %766 = vmatpush.msra.mxu0 0.0
    %767 = vmatpush.msra.mxu0 0.0
    %768 = vmatpush.msra.mxu0 0.0
    %769 = vmatpush.msra.mxu0 0.0
    %770 = vmatpush.msra.mxu0 0.0
    %771 = vmatpush.msra.mxu0 0.0
    %772 = vmatpush.msra.mxu0 %v720
    %773 = vmatmul.f32.gmra.mxu0 %v752
    %v774 = vpop.f32.mrf.mxu0
    %v775 = vadd.f32 %v746, %v774
    %776 = vmatmul.f32.gmra.mxu0 %v755
    %v777 = vpop.f32.mrf.mxu0
    %v778 = vadd.f32 %v749, %v777
    %779 = vdwg.mxu0
    %v780 = vld [vmem:[#allocation10 + $0x10] sm:$0xff]
    %v782 = vsel %vm240, %v649, 0
    %v785 = vsel %vm240, %v672, 0
    %787 = vmatpush.msra.mxu0 0.0
    %788 = vmatpush.msra.mxu0 0.0
    %789 = vmatpush.msra.mxu0 0.0
    %790 = vmatpush.msra.mxu0 0.0
    %791 = vmatpush.msra.mxu0 0.0
    %792 = vmatpush.msra.mxu0 0.0
    %793 = vmatpush.msra.mxu0 0.0
    %794 = vmatpush.msra.mxu0 0.0
    %795 = vmatpush.msra.mxu0 0.0
    %796 = vmatpush.msra.mxu0 0.0
    %797 = vmatpush.msra.mxu0 0.0
    %798 = vmatpush.msra.mxu0 0.0
    %799 = vmatpush.msra.mxu0 0.0
    %800 = vmatpush.msra.mxu0 0.0
    %801 = vmatpush.msra.mxu0 0.0
    %802 = vmatpush.msra.mxu0 %v780
    %803 = vmatmul.f32.gmra.mxu0 %v782
    %v804 = vpop.f32.mrf.mxu0
    %v805 = vadd.f32 0.0, %v804
    %806 = vmatmul.f32.gmra.mxu0 %v785
    %v807 = vpop.f32.mrf.mxu0
    %v808 = vadd.f32 0.0, %v807
    %809 = vdwg.mxu0
    %v810 = vadd.f32 %v775, %v805
    %v811 = vadd.f32 %v778, %v808
    %v812 = vld [vmem:[#allocation10 + $0x18] sm:$0xff]
    %v814 = vsel %vm240, %v695, 0
    %v817 = vsel %vm240, %v718, 0
    %819 = vmatpush.msra.mxu0 0.0
    %820 = vmatpush.msra.mxu0 0.0
    %821 = vmatpush.msra.mxu0 0.0
    %822 = vmatpush.msra.mxu0 0.0
    %823 = vmatpush.msra.mxu0 0.0
    %824 = vmatpush.msra.mxu0 0.0
    %825 = vmatpush.msra.mxu0 0.0
    %826 = vmatpush.msra.mxu0 0.0
    %827 = vmatpush.msra.mxu0 0.0
    %828 = vmatpush.msra.mxu0 0.0
    %829 = vmatpush.msra.mxu0 0.0
    %830 = vmatpush.msra.mxu0 0.0
    %831 = vmatpush.msra.mxu0 0.0
    %832 = vmatpush.msra.mxu0 0.0
    %833 = vmatpush.msra.mxu0 0.0
    %834 = vmatpush.msra.mxu0 %v812
    %835 = vmatmul.f32.gmra.mxu0 %v814
    %v836 = vpop.f32.mrf.mxu0
    %v837 = vadd.f32 0.0, %v836
    %838 = vmatmul.f32.gmra.mxu0 %v817
    %v839 = vpop.f32.mrf.mxu0
    %v840 = vadd.f32 0.0, %v839
    %841 = vdwg.mxu0
    %v842 = vadd.f32 %v810, %v837
    %v843 = vadd.f32 %v811, %v840
    %v844 = vld [vmem:[%s5] sm:$0x1]
    %v846 = vperm.slane %v844, 0
    %v848 = vadd.f32 %v842, %v846
    %v849 = vadd.f32 %v843, %v846
    %850 = vst.msk [vmem:[#allocation11] sm:$0xff] %vm108, %v848
    %851 = vst.msk [vmem:[#allocation11 + $0x8] sm:$0xff] %vm108, %v849
    // Predicated region
    $region46: #{tpu_custom_call.1} parent=1 // pred_check
      _
    $region47: #{tpu_custom_call.1} parent=1 // pred_check_branch
      %853 = sbr.rel (0) target = $region49
    $region48: #{tpu_custom_call.1} parent=1 // pred_region
      %855 = vsyncadd [#allocation4], 0
      %s856 = sshll.u32 [#allocation11], 4
      %s857 = int_to_ptr.vmem [resolvable:$true] %s856
      %s858 = sshll.u32 %s6, 4
      %s859 = int_to_ptr.hbm [resolvable:$true] %s858
      %864 = dma.vmem_to_hbm [thread:$0]  %s857, 256, %s859, [#allocation4], 128, 128, 8
    $region49: #{tpu_custom_call.1} parent=1 // pred_fallthru
      _
    // Predicated region
    $region50: #{tpu_custom_call.1} parent=1 // pred_check
      _
    $region51: #{tpu_custom_call.1} parent=1 // pred_check_branch
      %866 = sbr.rel (0) target = $region53
    $region52: #{tpu_custom_call.1} parent=1 // pred_region
      %868 = dma.done [#allocation4], 256
    $region53: #{tpu_custom_call.1} parent=1 // pred_fallthru
      _
    %869 = vsyncpa [#allocation3], 1
    %870 = vsyncpa [#allocation6], 1
    %871 = vsyncpa [#allocation9], 1
    %872 = vsyncpa [#allocation4], 1

</llo_original>
